<compile_context>
chip_gen: v7x
topology: tpu7x:2x2x1
jax: 0.10.0
libtpu: 0.0.40
codegen_flags: <defaults>
</compile_context>

<pallas_src>
import jax
import jax.numpy as jnp
from jax.experimental import pallas as pl
from jax.experimental.pallas import tpu as pltpu

_LANE = 128
_MAX_LANE_BLOCKS = 8          # cap cols at 8 * 128 = 1024 lanes
_TILE_BYTES = 4 << 20         # ~4 MiB per tile (v6e/v7x sweet spot)
_SMALL_BYTES = 4 << 20        # <= ~1 tile: single block, no grid
_VMEM_LIMIT = 32 << 20        # raise v5e's 16 MiB scoped default; fits all gens
_RAGGED_TILE_LANES = 64 * 1024  # ragged (1, N) path: 64K-lane blocks


def _relu_kernel(x_ref, o_ref):
    # Single VPU compare-with-immediate per vreg; no zeros tile materialized.
    o_ref[...] = jnp.maximum(x_ref[...], 0)


def _sublane_pack(dtype) -> int:
    """Rows per fully-packed vreg: 8 for 4-byte, 16 for 2-byte, 32 for 1-byte."""
    itemsize = jnp.dtype(dtype).itemsize
    return 8 * max(1, 4 // itemsize)


def _pick_lane_dense_2d(total: int, sublane: int):
    """Factor `total` (a multiple of 128) into (rows, cols) with cols a
    multiple of 128 (<= 1024), preferring rows % sublane == 0 so every vreg is
    completely full and all stores are unmasked vst."""
    lane_blocks = total // _LANE
    for require_packed_rows in (True, False):
        for b in range(min(lane_blocks, _MAX_LANE_BLOCKS), 0, -1):
            if lane_blocks % b:
                continue
            cols = _LANE * b
            rows = total // cols
            if require_packed_rows and rows % sublane:
                continue
            return rows, cols
    return total // _LANE, _LANE  # unreachable (b == 1 always matches)


def relu_pallas(x: jax.Array) -> jax.Array:
    """Pallas ReLU matching torch.nn.ReLU(inplace=False)."""
    orig_shape = x.shape
    total = x.size
    if total == 0:
        return x

    itemsize = jnp.dtype(x.dtype).itemsize
    total_bytes = total * itemsize
    flat = x.reshape(-1)  # contiguous reshape: free bitcast, no HBM traffic

    if total % _LANE == 0:
        # Lane-dense 2D view (free bitcast), no padding needed.
        sublane = _sublane_pack(x.dtype)
        rows, cols = _pick_lane_dense_2d(total, sublane)
        x2d = flat.reshape(rows, cols)

        if total_bytes <= _SMALL_BYTES:
            # Tiny/medium input: single full-array block (block == full dims,
            # so no divisibility constraint; grid steps would be pure overhead).
            out2d = pl.pallas_call(
                _relu_kernel,
                out_shape=jax.ShapeDtypeStruct((rows, cols), x.dtype),
                in_specs=[pl.BlockSpec((rows, cols), lambda: (0, 0))],
                out_specs=pl.BlockSpec((rows, cols), lambda: (0, 0)),
            )(x2d)
        else:
            # Gridded path: ~4 MiB tiles, double-buffered in+out = 16 MiB,
            # >= 2 steps so both v7x TensorCores get work.
            tile_rows = (_TILE_BYTES // (cols * itemsize)) // sublane * sublane
            tile_rows = min(rows, max(sublane, tile_rows))
            out2d = pl.pallas_call(
                _relu_kernel,
                out_shape=jax.ShapeDtypeStruct((rows, cols), x.dtype),
                grid=(pl.cdiv(rows, tile_rows),),
                in_specs=[pl.BlockSpec((tile_rows, cols), lambda i: (i, 0))],
                out_specs=pl.BlockSpec((tile_rows, cols), lambda i: (i, 0)),
                compiler_params=pltpu.CompilerParams(
                    dimension_semantics=("parallel",),
                    vmem_limit_bytes=_VMEM_LIMIT),
                cost_estimate=pl.CostEstimate(
                    flops=total, transcendentals=0,
                    bytes_accessed=2 * total_bytes),
            )(x2d)
        return out2d.reshape(orig_shape)

    # Ragged total (not a multiple of 128): no pad/slice copies. Run directly
    # on a (1, N) view; the trailing partial lane block is masked by Pallas.
    x2d = flat.reshape(1, total)
    if total <= _RAGGED_TILE_LANES:
        out2d = pl.pallas_call(
            _relu_kernel,
            out_shape=jax.ShapeDtypeStruct((1, total), x.dtype),
            in_specs=[pl.BlockSpec((1, total), lambda: (0, 0))],
            out_specs=pl.BlockSpec((1, total), lambda: (0, 0)),
        )(x2d)
    else:
        out2d = pl.pallas_call(
            _relu_kernel,
            out_shape=jax.ShapeDtypeStruct((1, total), x.dtype),
            grid=(pl.cdiv(total, _RAGGED_TILE_LANES),),
            in_specs=[pl.BlockSpec((1, _RAGGED_TILE_LANES), lambda i: (0, i))],
            out_specs=pl.BlockSpec((1, _RAGGED_TILE_LANES), lambda i: (0, i)),
            compiler_params=pltpu.CompilerParams(
                dimension_semantics=("parallel",),
                vmem_limit_bytes=_VMEM_LIMIT),
            cost_estimate=pl.CostEstimate(
                flops=total, transcendentals=0,
                bytes_accessed=2 * total_bytes),
        )(x2d)
    return out2d.reshape(orig_shape)


if __name__ == "__main__":
    # Net has no parameters (just nn.ReLU), so nothing to initialize.
    key = jax.random.PRNGKey(0)
    relu_jit = jax.jit(relu_pallas)

    # 1) Module-shaped input (NCHW), small: single lane-dense block path.
    x = jax.random.normal(key, (2, 4, 16, 16), dtype=jnp.float32)
    y = relu_jit(x)
    jax.block_until_ready(y)
    assert y.shape == x.shape and y.dtype == x.dtype
    assert jnp.allclose(y, jnp.maximum(x, 0.0)), "mismatch vs reference ReLU"

    # 2) Large f32 input: exercises the gridded (parallel, pipelined) path.
    x_big = jax.random.normal(jax.random.PRNGKey(1), (2048, 1024), jnp.float32)
    y_big = relu_jit(x_big)
    jax.block_until_ready(y_big)
    assert jnp.allclose(y_big, jnp.maximum(x_big, 0.0)), "mismatch (f32 tiled)"

    # 3) Large bf16 input: exercises dtype-aware sublane packing / tile sizing.
    x_bf = jax.random.normal(jax.random.PRNGKey(2), (4096, 1024), jnp.bfloat16)
    y_bf = relu_jit(x_bf)
    jax.block_until_ready(y_bf)
    assert jnp.allclose(y_bf, jnp.maximum(x_bf, 0)), "mismatch (bf16 tiled)"

    # 4) Ragged total (not a multiple of 128): pad-free masked path.
    x_odd = jax.random.normal(jax.random.PRNGKey(3), (3, 5, 7), jnp.float32)
    y_odd = relu_jit(x_odd)
    jax.block_until_ready(y_odd)
    assert jnp.allclose(y_odd, jnp.maximum(x_odd, 0.0)), "mismatch (ragged)"

    print("KERNEL_OK")
</pallas_src>

<mosaic_0001>
module attributes {stable_mosaic.version = 11 : i64} {
  func.func @_relu_kernel(%arg0: memref<8x256xf32, #tpu.memory_space<vmem>>, %arg1: memref<8x256xf32, #tpu.memory_space<vmem>>) attributes {dimension_semantics = [], scalar_prefetch = 0 : i64, scratch_operands = 0 : i64, tpu.core_type = #tpu.core_type<tc>} {
    %c0 = arith.constant 0 : index
    %c0_0 = arith.constant 0 : index
    %0 = vector.load %arg0[%c0, %c0_0] : memref<8x256xf32, #tpu.memory_space<vmem>>, vector<8x256xf32>
    %cst = arith.constant 0.000000e+00 : f32
    %1 = vector.broadcast %cst : f32 to vector<8x256xf32>
    %2 = arith.maximumf %0, %1 : vector<8x256xf32>
    %c0_1 = arith.constant 0 : index
    %c0_2 = arith.constant 0 : index
    %3 = vector.load %arg1[%c0_1, %c0_2] : memref<8x256xf32, #tpu.memory_space<vmem>>, vector<8x256xf32>
    tpu.vector_store %arg1[%c0_1, %c0_2], %2 {strides = array<i32>} : memref<8x256xf32, #tpu.memory_space<vmem>>, vector<8x256xf32>,
    return
  }
}

</mosaic_0001>

<llo_original>
// kernel: relu_pallas.1
$region0: #{relu_pallas.1}
  #allocation0 [shape = 'u32[]', space=smem, size = 0x4, offset = 0x4, fixed_abs, tag = 'smem constant byte address 0x4 - core index']
  #allocation1 [shape = 'u32[144,128]{1,0:T(1,128)}', space=vmem, size = 0x12000, scoped, tag = 'internal scratch']
  %s0 = inlined_call_operand.vmem [shape: f32[8,256], index: 0, kind: input, shape index: {}]
  %s1 = inlined_call_operand.vmem [shape: f32[8,256], index: 1, kind: output, shape index: {}]
  %s2 = sld [smem:[#allocation0]]
  $region14: #{relu_pallas.1} parent=0
    _
  %s4 = ssub.s32 1, %s2
  %s5 = scalar_select 0, %s4, %s2
  // Predicated region
  $region2: #{relu_pallas.1} parent=0 // pred_check
    _
  $region3: #{relu_pallas.1} parent=0 // pred_check_branch
    %7 = sbr.rel (0) target = $region5
  $region4: #{relu_pallas.1} parent=0 // pred_region
    _
  $region5: #{relu_pallas.1} parent=0 // pred_fallthru
    _
  %v8 = vld [vmem:[%s0] sm:$0xff]
  %v9 = vld [vmem:[%s0 + $0x8] sm:$0xff]
  %v10 = vmax.f32 %v8, 0.0
  %v11 = vmax.f32 %v9, 0.0
  %12 = vst [vmem:[%s1] sm:$0xff] %v10
  %13 = vst [vmem:[%s1 + $0x8] sm:$0xff] %v11
  // Predicated region
  $region6: #{relu_pallas.1} parent=0 // pred_check
    _
  $region7: #{relu_pallas.1} parent=0 // pred_check_branch
    %15 = sbr.rel (0) target = $region9
  $region8: #{relu_pallas.1} parent=0 // pred_region
    _
  $region9: #{relu_pallas.1} parent=0 // pred_fallthru
    _
  // Predicated region
  $region10: #{relu_pallas.1} parent=0 // pred_check
    _
  $region11: #{relu_pallas.1} parent=0 // pred_check_branch
    %17 = sbr.rel (0) target = $region13
  $region12: #{relu_pallas.1} parent=0 // pred_region
    _
  $region13: #{relu_pallas.1} parent=0 // pred_fallthru
    _

</llo_original>
